<compile_context>
chip_gen: v7x
topology: tpu7x:2x2x1
jax: 0.10.0
libtpu: 0.0.40
codegen_flags: <defaults>
</compile_context>

<pallas_src>
import functools

import jax
import jax.numpy as jnp
from jax.experimental import pallas as pl
from jax.experimental.pallas import tpu as pltpu

_LANE = 128  # lane width (last dim)


def _round_up(v, m):
    return ((v + m - 1) // m) * m


def _round_down(v, m):
    return (v // m) * m


def graph_linear_kernel(x_ref, w_ref, b_ref, o_ref, *, compute_dtype, use_mxu):
    # x_ref: (C_in, TILE_N)   original input dtype (cast happens here, in VMEM)
    # w_ref: (C_out, C_in)    compute dtype (cast once in the wrapper; tiny)
    # b_ref: (C_out, 1)       float32
    # o_ref: (C_out, TILE_N)  output dtype
    x = x_ref[...]
    w = w_ref[...]
    if x.dtype != compute_dtype:
        x = x.astype(compute_dtype)

    if use_mxu:
        y = jnp.dot(w, x, preferred_element_type=jnp.float32)
    else:
        # Tiny-C_in path: unrolled f32 VPU multiply-accumulate.
        # (C_out,1) * (1,TILE_N) broadcasts -> (C_out,TILE_N); exact f32, no MXU.
        xf = x.astype(jnp.float32)
        wf = w.astype(jnp.float32)
        y = wf[:, 0:1] * xf[0:1, :]
        for k in range(1, x.shape[0]):
            y = y + wf[:, k:k + 1] * xf[k:k + 1, :]

    o_ref[...] = (y + b_ref[...]).astype(o_ref.dtype)


def graph_linear(x, W, b, *, compute_dtype=jnp.float32, out_dtype=None,
                 target_tile_bytes=2 * 1024 * 1024):
    """x: [B, C_in, N], W: [C_out, C_in], b: [C_out] -> [B, C_out, N]."""
    B, C_in, N = x.shape
    C_out = W.shape[0]
    out_dtype = x.dtype if out_dtype is None else jnp.dtype(out_dtype)

    itm_x = jnp.dtype(x.dtype).itemsize
    itm_o = jnp.dtype(out_dtype).itemsize
    itm_c = jnp.dtype(compute_dtype).itemsize

    # ---- node tile sized by bytes (x tile + out tile ~ target), 128-aligned ----
    per_col_bytes = C_in * itm_x + C_out * itm_o
    tn = max(_LANE, _round_down(target_tile_bytes // per_col_bytes, _LANE))
    tn = min(tn, _round_up(N, _LANE))
    # v7x (2 TCs/chip): make sure the "parallel" axes expose >= 2 grid steps.
    if B == 1 and tn >= N and N > _LANE:
        tn = _round_up(pl.cdiv(N, 2), _LANE)
    grid = (B, pl.cdiv(N, tn))

    # ---- small, resident operands: cast W once, bias stays f32 ----------------
    Wc = W.astype(compute_dtype)
    b2d = b.astype(jnp.float32).reshape(C_out, 1)

    # ---- VMEM budget: double-buffered x/out tiles + double-buffered W/b + acc --
    vmem_needed = (2 * C_in * tn * itm_x
                   + 2 * C_out * tn * itm_o
                   + 2 * (C_out * C_in * itm_c + C_out * 4)
                   + C_out * tn * 4)
    # Headroom, but stay well below v7x's 64 MiB physical VMEM per TC.
    vmem_limit = int(min(max(2 * vmem_needed, 32 * 1024 * 1024), 48 * 1024 * 1024))

    # ---- cost hint for the XLA scheduler (no padded copies anymore) ------------
    cost = pl.CostEstimate(
        flops=2 * B * C_out * C_in * N,
        transcendentals=0,
        bytes_accessed=(B * C_in * N * itm_x
                        + C_out * C_in * itm_c
                        + B * C_out * N * itm_o),
    )

    kernel = functools.partial(graph_linear_kernel,
                               compute_dtype=jnp.dtype(compute_dtype),
                               use_mxu=C_in > 32)

    return pl.pallas_call(
        kernel,
        out_shape=jax.ShapeDtypeStruct((B, C_out, N), out_dtype),
        grid_spec=pltpu.PrefetchScalarGridSpec(
            num_scalar_prefetch=0,
            grid=grid,
            in_specs=[
                # x: batch squeezed, full channel dim, 128-multiple node tile
                # (last tile may overhang N; Pallas masks the boundary stores).
                pl.BlockSpec((pl.Squeezed(), C_in, tn),
                             lambda bi, ni: (bi, 0, ni)),
                # W / b: small, resident, same block every grid step
                pl.BlockSpec((C_out, C_in), lambda bi, ni: (0, 0)),
                pl.BlockSpec((C_out, 1), lambda bi, ni: (0, 0)),
            ],
            out_specs=pl.BlockSpec((pl.Squeezed(), C_out, tn),
                                   lambda bi, ni: (bi, 0, ni)),
        ),
        compiler_params=pltpu.CompilerParams(
            dimension_semantics=("parallel", "parallel"),
            vmem_limit_bytes=vmem_limit,
        ),
        cost_estimate=cost,
    )(x, Wc, b2d)


if __name__ == "__main__":
    # Small shapes consistent with the module's forward: x is [B, in_channels, N]
    B, in_channels, out_channels, N = 2, 4, 8, 16

    key = jax.random.PRNGKey(0)
    kx, kw, kb = jax.random.split(key, 3)

    # Deterministic "reset_parameters": uniform(-w_stdv, w_stdv)
    w_stdv = 1.0 / (in_channels * out_channels)
    W = jax.random.uniform(kw, (out_channels, in_channels),
                           minval=-w_stdv, maxval=w_stdv, dtype=jnp.float32)
    b = jax.random.uniform(kb, (out_channels,),
                           minval=-w_stdv, maxval=w_stdv, dtype=jnp.float32)

    x = jax.random.normal(kx, (B, in_channels, N), dtype=jnp.float32)

    out = graph_linear(x, W, b)  # f32 compute path = parity with torch
    out = jax.block_until_ready(out)

    # Reference: same math as torch.matmul + bias broadcast, in full f32.
    ref = (jnp.einsum("oc,bcn->bon", W, x, precision=jax.lax.Precision.HIGHEST)
           + b[None, :, None])

    assert out.shape == (B, out_channels, N)
    assert jnp.allclose(out, ref, atol=1e-5, rtol=1e-4), \
        float(jnp.max(jnp.abs(out - ref)))

    print("KERNEL_OK")
</pallas_src>

<mosaic_0001>
module attributes {stable_mosaic.version = 11 : i64} {
  func.func @graph_linear_kernel(%arg0: i32, %arg1: i32, %arg2: memref<1x4x128xf32, #tpu.memory_space<vmem>>, %arg3: memref<8x4xf32, #tpu.memory_space<vmem>>, %arg4: memref<8x1xf32, #tpu.memory_space<vmem>>, %arg5: memref<1x8x128xf32, #tpu.memory_space<vmem>>) attributes {dimension_semantics = [#tpu.dimension_semantics<parallel>, #tpu.dimension_semantics<parallel>], iteration_bounds = array<i64: 2, 1>, scalar_prefetch = 0 : i64, scratch_operands = 0 : i64, tpu.core_type = #tpu.core_type<tc>, window_params = [{transform_indices = @transform_0, window_bounds = array<i64: 1, 4, 128>}, {pipeline_mode = #tpu.pipeline_mode<synchronous>, transform_indices = @transform_1, window_bounds = array<i64: 8, 4>}, {pipeline_mode = #tpu.pipeline_mode<synchronous>, transform_indices = @transform_2, window_bounds = array<i64: 8, 1>}, {transform_indices = @transform_3, window_bounds = array<i64: 1, 8, 128>}]} {
    %c0 = arith.constant 0 : index
    %c0_0 = arith.constant 0 : index
    %c0_1 = arith.constant 0 : index
    %0 = vector.load %arg2[%c0, %c0_0, %c0_1] : memref<1x4x128xf32, #tpu.memory_space<vmem>>, vector<1x4x128xf32>
    %1 = vector.shape_cast %0 : vector<1x4x128xf32> to vector<4x128xf32>
    %c0_2 = arith.constant 0 : index
    %c0_3 = arith.constant 0 : index
    %2 = vector.load %arg3[%c0_2, %c0_3] : memref<8x4xf32, #tpu.memory_space<vmem>>, vector<8x4xf32>
    %3 = vector.extract_strided_slice %2 {offsets = [0, 0], sizes = [8, 1], strides = [1, 1]} : vector<8x4xf32> to vector<8x1xf32>
    %4 = vector.extract_strided_slice %1 {offsets = [0, 0], sizes = [1, 128], strides = [1, 1]} : vector<4x128xf32> to vector<1x128xf32>
    %5 = vector.broadcast %3 : vector<8x1xf32> to vector<8x128xf32>
    %6 = vector.broadcast %4 : vector<1x128xf32> to vector<8x128xf32>
    %7 = arith.mulf %5, %6 : vector<8x128xf32>
    %8 = vector.extract_strided_slice %2 {offsets = [0, 1], sizes = [8, 1], strides = [1, 1]} : vector<8x4xf32> to vector<8x1xf32>
    %9 = vector.extract_strided_slice %1 {offsets = [1, 0], sizes = [1, 128], strides = [1, 1]} : vector<4x128xf32> to vector<1x128xf32>
    %10 = vector.broadcast %8 : vector<8x1xf32> to vector<8x128xf32>
    %11 = vector.broadcast %9 : vector<1x128xf32> to vector<8x128xf32>
    %12 = arith.mulf %10, %11 : vector<8x128xf32>
    %13 = arith.addf %7, %12 : vector<8x128xf32>
    %14 = vector.extract_strided_slice %2 {offsets = [0, 2], sizes = [8, 1], strides = [1, 1]} : vector<8x4xf32> to vector<8x1xf32>
    %15 = vector.extract_strided_slice %1 {offsets = [2, 0], sizes = [1, 128], strides = [1, 1]} : vector<4x128xf32> to vector<1x128xf32>
    %16 = vector.broadcast %14 : vector<8x1xf32> to vector<8x128xf32>
    %17 = vector.broadcast %15 : vector<1x128xf32> to vector<8x128xf32>
    %18 = arith.mulf %16, %17 : vector<8x128xf32>
    %19 = arith.addf %13, %18 : vector<8x128xf32>
    %20 = vector.extract_strided_slice %2 {offsets = [0, 3], sizes = [8, 1], strides = [1, 1]} : vector<8x4xf32> to vector<8x1xf32>
    %21 = vector.extract_strided_slice %1 {offsets = [3, 0], sizes = [1, 128], strides = [1, 1]} : vector<4x128xf32> to vector<1x128xf32>
    %22 = vector.broadcast %20 : vector<8x1xf32> to vector<8x128xf32>
    %23 = vector.broadcast %21 : vector<1x128xf32> to vector<8x128xf32>
    %24 = arith.mulf %22, %23 : vector<8x128xf32>
    %25 = arith.addf %19, %24 : vector<8x128xf32>
    %c0_4 = arith.constant 0 : index
    %c0_5 = arith.constant 0 : index
    %26 = vector.load %arg4[%c0_4, %c0_5] : memref<8x1xf32, #tpu.memory_space<vmem>>, vector<8x1xf32>
    %27 = vector.broadcast %26 : vector<8x1xf32> to vector<8x128xf32>
    %28 = arith.addf %25, %27 : vector<8x128xf32>
    %c0_6 = arith.constant 0 : index
    %c0_7 = arith.constant 0 : index
    %c0_8 = arith.constant 0 : index
    %29 = vector.load %arg5[%c0_6, %c0_7, %c0_8] : memref<1x8x128xf32, #tpu.memory_space<vmem>>, vector<1x8x128xf32>
    %30 = vector.shape_cast %29 : vector<1x8x128xf32> to vector<8x128xf32>
    %31 = vector.shape_cast %28 : vector<8x128xf32> to vector<1x8x128xf32>
    tpu.vector_store %arg5[%c0_6, %c0_7, %c0_8], %31 {strides = array<i32>} : memref<1x8x128xf32, #tpu.memory_space<vmem>>, vector<1x8x128xf32>,
    return
  }
  func.func @transform_0(%arg0: i32, %arg1: i32) -> (i32, i32, i32) {
    %c0_i32 = arith.constant 0 : i32
    %c0_i32_0 = arith.constant 0 : i32
    return %arg0, %c0_i32, %arg1 : i32, i32, i32
  }
  func.func @transform_1(%arg0: i32, %arg1: i32) -> (i32, i32) {
    %c0_i32 = arith.constant 0 : i32
    %c0_i32_0 = arith.constant 0 : i32
    %c0_i32_1 = arith.constant 0 : i32
    return %c0_i32, %c0_i32_0 : i32, i32
  }
  func.func @transform_2(%arg0: i32, %arg1: i32) -> (i32, i32) {
    %c0_i32 = arith.constant 0 : i32
    %c0_i32_0 = arith.constant 0 : i32
    %c0_i32_1 = arith.constant 0 : i32
    return %c0_i32, %c0_i32_0 : i32, i32
  }
  func.func @transform_3(%arg0: i32, %arg1: i32) -> (i32, i32, i32) {
    %c0_i32 = arith.constant 0 : i32
    %c0_i32_0 = arith.constant 0 : i32
    return %arg0, %c0_i32, %arg1 : i32, i32, i32
  }
}

</mosaic_0001>

<llo_original>
// kernel: tpu_custom_call.1
$region0: #{tpu_custom_call.1}
  #allocation0 [shape = 'u32[]', space=smem, size = 0x4, offset = 0x4, fixed_abs, tag = 'smem constant byte address 0x4 - core index']
  #allocation1 [shape = 'u32[144,128]{1,0:T(1,128)}', space=vmem, size = 0x12000, scoped, tag = 'internal scratch']
  %s0 = inlined_call_operand.vmem [shape: f32[2,4,16], index: 0, kind: input, shape index: {}]
  %s1 = inlined_call_operand.vmem [shape: f32[8,4], index: 1, kind: input, shape index: {}]
  %s2 = inlined_call_operand.vmem [shape: f32[8,1], index: 2, kind: input, shape index: {}]
  %s3 = inlined_call_operand.hbm [shape: f32[2,8,16], index: 3, kind: output, shape index: {}]
  %s4 = sld [smem:[#allocation0]]
  $region45: #{tpu_custom_call.1} parent=0
    _
  %s6 = ssub.s32 1, %s4
  %s7 = scalar_select 0, %s6, %s4
  $region1: #{tpu_custom_call.1} parent=0
    #allocation2 [shape = 'u8[8192]{0}', space=vmem, size = 0x2000, scoped, tag = 'output window, operand 0']
    #allocation3 [shape = 's32[2]{0}', space=sflag, size = 0x8, scoped, tag = 'scoped memory for tpu_custom_call.1']
    %8 = vsyncpa [#allocation3], 0
    %s9 = scalar_lea.sflag [#allocation3], 1
    %10 = vsyncpa %s9, 0
    loop: start=0, step=1, limit=4
    $region2: #{tpu_custom_call.1} parent=1 // loop_pre_header
      _
    $region3: #{tpu_custom_call.1} parent=1 // loop_header
      %s12 = sphi 0, %s16
      %p13 = scmp.ge.s32.totalorder %s12, 4
      %s19 = sphi 0, %s31
      %s20 = sphi 0, %s27
      %s21 = sphi 0, %s19
      %s22 = sphi 0, %s20
      %s23 = sphi 0, %s21
      %s24 = sphi 0, %s22
      %s36 = sphi 0, %s38
      %s39 = sphi 0, %s36
      %s40 = sphi 0, %s39
      %s56 = sphi 0, %s40
      %s60 = sphi 0, %s60
      %s62 = sphi 0, %s60
      %s63 = sphi 0, %s62
      %s77 = sphi 0, %s63
      %s81 = sphi 0, %s81
      %s83 = sphi 0, %s81
      %s84 = sphi 0, %s83
      %s98 = sphi 0, %s84
      %s106 = sphi 0, %s108
      %s109 = sphi 0, %s106
      %s110 = sphi 0, %s109
      %s126 = sphi 0, %s110
    $region4: #{tpu_custom_call.1} parent=1 // loop_header_branch
      %15 = sbr.rel (%p13) target = $region8
    $region5: #{tpu_custom_call.1} parent=1 // loop_body
      %s17 = ssub.s32 %s12, 1
      %s18 = ssub.s32 %s12, 2
      %s25 = sadd.s32 1, %s20
      %p26 = scmp.ge.s32.totalorder %s25, 1
      %s27 = scalar_select %p26, 0, %s25
      %s28 = sadd.s32 1, %s19
      %s29 = scalar_select %p26, %s28, %s19
      %p30 = scmp.ge.s32.totalorder %s29, 2
      %s31 = scalar_select %p30, 0, %s29
      %s32 = ssub.s32 %s19, %s31
      %s33 = ssub.s32 %s20, %s27
      %s34 = sor.u32 %s32, %s33
      %p35 = scmp.eq.s32.totalorder %s34, 0
      %s37 = sadd.s32 %s36, 1
      %s38 = scalar_select %p35, %s36, %s37
      %p41 = pneg %p35
      %p42 = scmp.eq.s32.totalorder %s12, 1
      %p43 = por %p41, %p42
      %p44 = scmp.ne.s32.totalorder %s36, %s39
      %p45 = scmp.eq.s32.totalorder %s12, 0
      %p46 = por %p44, %p45
      %p47 = scmp.ne.s32.totalorder %s36, %s39
      %p48 = scmp.eq.s32.totalorder %s17, 1
      %p49 = por %p47, %p48
      %p50 = scmp.ne.s32.totalorder %s39, %s40
      %p51 = scmp.eq.s32.totalorder %s17, 0
      %p52 = por %p50, %p51
      %p53 = scmp.ne.s32.totalorder %s39, %s40
      %p54 = scmp.eq.s32.totalorder %s18, 1
      %p55 = por %p53, %p54
      %p57 = scmp.ne.s32.totalorder %s40, %s56
      %p58 = scmp.eq.s32.totalorder %s18, 0
      %p59 = por %p57, %p58
      %s61 = sadd.s32 %s60, 1
      %p64 = scmp.eq.s32.totalorder %s12, 1
      %p65 = scmp.ne.s32.totalorder %s60, %s62
      %p66 = scmp.eq.s32.totalorder %s12, 0
      %p67 = por %p65, %p66
      %p68 = scmp.ne.s32.totalorder %s60, %s62
      %p69 = scmp.eq.s32.totalorder %s17, 1
      %p70 = por %p68, %p69
      %p71 = scmp.ne.s32.totalorder %s62, %s63
      %p72 = scmp.eq.s32.totalorder %s17, 0
      %p73 = por %p71, %p72
      %p74 = scmp.ne.s32.totalorder %s62, %s63
      %p75 = scmp.eq.s32.totalorder %s18, 1
      %p76 = por %p74, %p75
      %p78 = scmp.ne.s32.totalorder %s63, %s77
      %p79 = scmp.eq.s32.totalorder %s18, 0
      %p80 = por %p78, %p79
      %s82 = sadd.s32 %s81, 1
      %p85 = scmp.eq.s32.totalorder %s12, 1
      %p86 = scmp.ne.s32.totalorder %s81, %s83
      %p87 = scmp.eq.s32.totalorder %s12, 0
      %p88 = por %p86, %p87
      %p89 = scmp.ne.s32.totalorder %s81, %s83
      %p90 = scmp.eq.s32.totalorder %s17, 1
      %p91 = por %p89, %p90
      %p92 = scmp.ne.s32.totalorder %s83, %s84
      %p93 = scmp.eq.s32.totalorder %s17, 0
      %p94 = por %p92, %p93
      %p95 = scmp.ne.s32.totalorder %s83, %s84
      %p96 = scmp.eq.s32.totalorder %s18, 1
      %p97 = por %p95, %p96
      %p99 = scmp.ne.s32.totalorder %s84, %s98
      %p100 = scmp.eq.s32.totalorder %s18, 0
      %p101 = por %p99, %p100
      %s102 = ssub.s32 %s19, %s31
      %s103 = ssub.s32 %s20, %s27
      %s104 = sor.u32 %s102, %s103
      %p105 = scmp.eq.s32.totalorder %s104, 0
      %s107 = sadd.s32 %s106, 1
      %s108 = scalar_select %p105, %s106, %s107
      %p111 = pneg %p105
      %p112 = scmp.eq.s32.totalorder %s12, 1
      %p113 = por %p111, %p112
      %p114 = scmp.ne.s32.totalorder %s106, %s109
      %p115 = scmp.eq.s32.totalorder %s12, 0
      %p116 = por %p114, %p115
      %p117 = scmp.ne.s32.totalorder %s106, %s109
      %p118 = scmp.eq.s32.totalorder %s17, 1
      %p119 = por %p117, %p118
      %p120 = scmp.ne.s32.totalorder %s109, %s110
      %p121 = scmp.eq.s32.totalorder %s17, 0
      %p122 = por %p120, %p121
      %p123 = scmp.ne.s32.totalorder %s109, %s110
      %p124 = scmp.eq.s32.totalorder %s18, 1
      %p125 = por %p123, %p124
      %p127 = scmp.ne.s32.totalorder %s110, %s126
      %p128 = scmp.eq.s32.totalorder %s18, 0
      %p129 = por %p127, %p128
      %p130 = scmp.le.s32.totalorder 1, %s12
      %p131 = scmp.lt.s32.totalorder %s12, 3
      %p132 = pnand %p130, %p131
      %p133 = pneg %p132
      // Predicated region
      $region9: #{tpu_custom_call.1} parent=5 // pred_check
        _
      $region10: #{tpu_custom_call.1} parent=5 // pred_check_branch
        %135 = sbr.rel (%p132) target = $region12
      $region11: #{tpu_custom_call.1} parent=5 // pred_region
        %s136 = ssub.s32 %s12, 1
        // Predicated region
        $region13: #{tpu_custom_call.1} parent=11 // pred_check
          %p137 = pneg %p73
        $region14: #{tpu_custom_call.1} parent=11 // pred_check_branch
          %139 = sbr.rel (%p137) target = $region16
        $region15: #{tpu_custom_call.1} parent=11 // pred_region
          _
        $region16: #{tpu_custom_call.1} parent=11 // pred_fallthru
          _
        // Predicated region
        $region17: #{tpu_custom_call.1} parent=11 // pred_check
          %p140 = pneg %p94
        $region18: #{tpu_custom_call.1} parent=11 // pred_check_branch
          %142 = sbr.rel (%p140) target = $region20
        $region19: #{tpu_custom_call.1} parent=11 // pred_region
          _
        $region20: #{tpu_custom_call.1} parent=11 // pred_fallthru
          _
      $region12: #{tpu_custom_call.1} parent=5 // pred_fallthru
        _
      %p143 = scmp.lt.s32.totalorder %s12, 2
      // Predicated region
      $region21: #{tpu_custom_call.1} parent=5 // pred_check
        %p144 = pneg %p143
      $region22: #{tpu_custom_call.1} parent=5 // pred_check_branch
        %146 = sbr.rel (%p144) target = $region24
      $region23: #{tpu_custom_call.1} parent=5 // pred_region
        // Predicated region
        $region25: #{tpu_custom_call.1} parent=23 // pred_check
          %p147 = pneg %p46
        $region26: #{tpu_custom_call.1} parent=23 // pred_check_branch
          %149 = sbr.rel (%p147) target = $region28
        $region27: #{tpu_custom_call.1} parent=23 // pred_region
          %p150 = scmp.lt.s32.totalorder %s19, 1
          %s151 = scalar_select %p150, %s19, 1
          %p152 = scmp.lt.s32.totalorder %s20, 0
          %s153 = scalar_select %p152, %s20, 0
          %s154 = sadd.s32 %s153, %s151
          %s155 = smul.addr %s154, 4
          %s156 = scalar_lea.vmem %s0, %s155
        $region28: #{tpu_custom_call.1} parent=23 // pred_fallthru
          _
      $region24: #{tpu_custom_call.1} parent=5 // pred_fallthru
        _
      %p157 = scmp.le.s32.totalorder 1, %s12
      %p158 = scmp.lt.s32.totalorder %s12, 3
      %p159 = pnand %p157, %p158
      %p160 = pneg %p159
      // Predicated region
      $region29: #{tpu_custom_call.1} parent=5 // pred_check
        _
      $region30: #{tpu_custom_call.1} parent=5 // pred_check_branch
        %162 = sbr.rel (%p159) target = $region32
      $region31: #{tpu_custom_call.1} parent=5 // pred_region
        %s163 = ssub.s32 %s12, 1
        %p164 = scmp.lt.s32.totalorder %s21, 1
        %s165 = scalar_select %p164, %s21, 1
        %p166 = scmp.lt.s32.totalorder %s22, 0
        %s167 = scalar_select %p166, %s22, 0
        %s168 = sadd.s32 %s167, %s165
        %s169 = smul.addr %s168, 4
        %s170 = scalar_lea.vmem %s0, %s169
        %p171 = pneg %p52
        %p172 = pneg %p49
        %p173 = pneg %p73
        %p174 = pneg %p70
        %p175 = pneg %p94
        %p176 = pneg %p91
        %p177 = pneg %p122
        %p178 = pneg %p119
        %s179 = sand.u32 %s109, 1
        %s180 = scalar_lea.sflag [#allocation3], %s179
        %s181 = sand.u32 %s109, 1
        %s182 = smul.addr %s181, 8
        %s183 = scalar_lea.vmem [#allocation2], %s182
        %p184 = scmp.lt.s32.totalorder %s21, 1
        %s185 = scalar_select %p184, %s21, 1
        %p186 = scmp.lt.s32.totalorder %s22, 0
        %s187 = scalar_select %p186, %s22, 0
        %s188 = sadd.s32 %s187, %s185
        %s189 = smul.addr %s188, 4
        %s190 = scalar_lea.vmem %s0, %s189
        %v191 = vld [vmem:[%s190] sm:$0xf]
        %v192 = vld [vmem:[%s1] sm:$0xff]
        %194 = vset.pattern.permute.xlu0 0
        %195 = vperm.xlu0 %194, %v192
        %v196 = vpop.permute.xlu0 %195
        %v198 = vlaneseq
        %v199 = vshrl.u32 %v198, 7
        %v200 = vsub.s32 0, %v199
        %v201 = vrot.slane %v191, %v200
        %v202 = vmul.f32 %v196, %v201
        %203 = vset.pattern.permute.xlu0 1
        %204 = vperm.xlu0 %203, %v192
        %v205 = vpop.permute.xlu0 %204
        %v207 = vlaneseq
        %v208 = vshrl.u32 %v207, 7
        %v209 = vsub.s32 1, %v208
        %v210 = vrot.slane %v191, %v209
        %v211 = vmul.f32 %v205, %v210
        %v212 = vadd.f32 %v202, %v211
        %213 = vset.pattern.permute.xlu0 2
        %214 = vperm.xlu0 %213, %v192
        %v215 = vpop.permute.xlu0 %214
        %v217 = vlaneseq
        %v218 = vshrl.u32 %v217, 7
        %v219 = vsub.s32 2, %v218
        %v220 = vrot.slane %v191, %v219
        %v221 = vmul.f32 %v215, %v220
        %v222 = vadd.f32 %v212, %v221
        %223 = vset.pattern.permute.xlu0 3
        %224 = vperm.xlu0 %223, %v192
        %v225 = vpop.permute.xlu0 %224
        %v227 = vlaneseq
        %v228 = vshrl.u32 %v227, 7
        %v229 = vsub.s32 3, %v228
        %v230 = vrot.slane %v191, %v229
        %v231 = vmul.f32 %v225, %v230
        %v232 = vadd.f32 %v222, %v231
        %v233 = vld [vmem:[%s2] sm:$0xff]
        %235 = vset.pattern.permute.xlu0 0
        %236 = vperm.xlu0 %235, %v233
        %v237 = vpop.permute.xlu0 %236
        %v239 = vadd.f32 %v232, %v237
        %240 = vst [vmem:[%s183] sm:$0xff] %v239
        %s241 = sand.u32 %s109, 1
        %s242 = scalar_lea.sflag [#allocation3], %s241
        %s243 = sand.u32 %s109, 1
        %s244 = smul.addr %s243, 8
        %s245 = scalar_lea.vmem [#allocation2], %s244
        // Predicated region
        $region33: #{tpu_custom_call.1} parent=31 // pred_check
          %p246 = pneg %p119
        $region34: #{tpu_custom_call.1} parent=31 // pred_check_branch
          %248 = sbr.rel (%p246) target = $region36
        $region35: #{tpu_custom_call.1} parent=31 // pred_region
          %s250 = ssub.s32 128, 128
          %251 = vsyncadd %s242, %s250
          %s252 = sadd.s32 %s22, %s21
          %s253 = smul.addr %s252, 128
          %s254 = scalar_lea.hbm %s3, %s253
          %s256 = sshll.u32 %s245, 4
          %s257 = int_to_ptr.vmem [resolvable:$true] %s256
          %259 = dma.vmem_to_hbm [thread:$0]  %s257, 128, %s254, %s242
        $region36: #{tpu_custom_call.1} parent=31 // pred_fallthru
          _
      $region32: #{tpu_custom_call.1} parent=5 // pred_fallthru
        _
      %p260 = scmp.le.s32.totalorder 2, %s12
      // Predicated region
      $region37: #{tpu_custom_call.1} parent=5 // pred_check
        %p261 = pneg %p260
      $region38: #{tpu_custom_call.1} parent=5 // pred_check_branch
        %263 = sbr.rel (%p261) target = $region40
      $region39: #{tpu_custom_call.1} parent=5 // pred_region
        %s264 = ssub.s32 %s12, 2
        // Predicated region
        $region41: #{tpu_custom_call.1} parent=39 // pred_check
          %p265 = pneg %p125
        $region42: #{tpu_custom_call.1} parent=39 // pred_check_branch
          %267 = sbr.rel (%p265) target = $region44
        $region43: #{tpu_custom_call.1} parent=39 // pred_region
          %s268 = sand.u32 %s110, 1
          %s269 = scalar_lea.sflag [#allocation3], %s268
          %s270 = sand.u32 %s110, 1
          %s271 = smul.addr %s270, 8
          %s272 = scalar_lea.vmem [#allocation2], %s271
          %273 = dma.done %s269, 128
        $region44: #{tpu_custom_call.1} parent=39 // pred_fallthru
          _
      $region40: #{tpu_custom_call.1} parent=5 // pred_fallthru
        _
    $region6: #{tpu_custom_call.1} parent=1 // loop_footer
      %s16 = sadd.s32 1, %s12
    $region7: #{tpu_custom_call.1} parent=1 // loop_footer_branch
      %11 = sbr.rel target = $region3
    $region8: #{tpu_custom_call.1} parent=1 // loop_exit
      _
    %274 = vsyncpa [#allocation3], 1
    %s275 = scalar_lea.sflag [#allocation3], 1
    %276 = vsyncpa %s275, 1

</llo_original>
